<compile_context>
chip_gen: v6e
topology: v6e:2x2x1
jax: 0.10.0
libtpu: 0.0.40
codegen_flags: <defaults>
</compile_context>

<pallas_src>
import jax
import jax.numpy as jnp
from jax.experimental import pallas as pl
from jax.experimental.pallas import tpu as pltpu


def _round_up(n, m):
    return ((n + m - 1) // m) * m


def _improved_net_kernel(x_ref,
                         w1_ref, b1_ref,
                         w2_ref, b2_ref,
                         w3_ref, b3_ref,
                         w4t_ref, b4_ref,
                         o_ref):
    """One batch tile of the fused MLP.

    x_ref:   (TB, D) in the matmul compute dtype (bf16 or f32)
    w*_ref:  weights in compute dtype, stored (in, out); w4t_ref is (1, 32)
    b*_ref:  f32 biases, shape (1, out); b4_ref is (1, 1)
    o_ref:   (1, TB) f32 -- batch on the lane axis (lane-dense stores)
    """
    cdt = x_ref.dtype  # MXU operand dtype

    h = jnp.dot(x_ref[...], w1_ref[...], preferred_element_type=jnp.float32)
    h = jnp.maximum(h + b1_ref[...], 0.0)                     # fc1 + ReLU

    h = jnp.dot(h.astype(cdt), w2_ref[...], preferred_element_type=jnp.float32)
    h = jnp.maximum(h + b2_ref[...], 0.0)                     # fc2 + ReLU

    h = jnp.dot(h.astype(cdt), w3_ref[...], preferred_element_type=jnp.float32)
    h = jnp.maximum(h + b3_ref[...], 0.0)                     # fc3 + ReLU

    # Final layer emitted transposed: (1, 32) . (TB, 32)^T -> (1, TB) so the
    # output store is a full-width unmasked vst instead of masked 1-lane
    # stores that a (TB, 1) layout would generate.
    logits = jax.lax.dot_general(
        w4t_ref[...], h.astype(cdt),
        dimension_numbers=(((1,), (1,)), ((), ())),
        preferred_element_type=jnp.float32)
    logits = logits + b4_ref[...]                              # (1, 1) bias
    o_ref[...] = jax.nn.sigmoid(logits).astype(o_ref.dtype)    # Sigmoid


def improved_net_forward(x, params, *, tile_b=1024, use_bf16=True):
    """Fused ImprovedNet forward. x: (B, D) float32. Returns (B, 1) float32."""
    B, D = x.shape

    # Batch tile: multiple of 128 (lane width of the transposed output row).
    TB = min(tile_b, _round_up(max(B, 1), 128))
    B_pad = _round_up(B, TB)
    if B_pad != B:
        x = jnp.pad(x, ((0, B_pad - B), (0, 0)))   # pad rows; sliced off below

    cdt = jnp.bfloat16 if use_bf16 else jnp.float32
    xin = x.astype(cdt)
    w1 = params["W1"].astype(cdt)
    w2 = params["W2"].astype(cdt)
    w3 = params["W3"].astype(cdt)
    w4t = params["W4"].T.astype(cdt)               # (1, 32)
    b1, b2, b3, b4 = params["b1"], params["b2"], params["b3"], params["b4"]

    def _resident(a):
        # Whole-array block with a constant index_map -> fetched once, kept in
        # VMEM across all grid iterations.
        return pl.BlockSpec(a.shape, lambda i: (0, 0))

    grid = (B_pad // TB,)

    flops = 2 * B_pad * (D * 128 + 128 * 64 + 64 * 32 + 32 * 1)
    bytes_accessed = int(
        xin.size * xin.dtype.itemsize + B_pad * 4 +
        sum(a.size * a.dtype.itemsize
            for a in (w1, b1, w2, b2, w3, b3, w4t, b4)))

    out = pl.pallas_call(
        _improved_net_kernel,
        out_shape=jax.ShapeDtypeStruct((1, B_pad), jnp.float32),
        grid=grid,
        in_specs=[
            pl.BlockSpec((TB, D), lambda i: (i, 0)),   # streamed batch tile
            _resident(w1), _resident(b1),
            _resident(w2), _resident(b2),
            _resident(w3), _resident(b3),
            _resident(w4t), _resident(b4),
        ],
        out_specs=pl.BlockSpec((1, TB), lambda i: (0, i)),
        compiler_params=pltpu.CompilerParams(
            dimension_semantics=("parallel",)),        # 2-TC sharding on v7x
        cost_estimate=pl.CostEstimate(
            flops=int(flops),
            transcendentals=int(B_pad),
            bytes_accessed=bytes_accessed),
    )(xin, w1, b1, w2, b2, w3, b3, w4t, b4)

    return out[0, :B, None]                            # back to (B, 1)


def init_params(input_dim, key):
    """Deterministic init mimicking nn.Linear's default uniform init."""
    dims = [(input_dim, 128), (128, 64), (64, 32), (32, 1)]
    params = {}
    for i, (fan_in, fan_out) in enumerate(dims, start=1):
        key, kw, kb = jax.random.split(key, 3)
        bound = 1.0 / jnp.sqrt(jnp.float32(fan_in))
        params[f"W{i}"] = jax.random.uniform(
            kw, (fan_in, fan_out), jnp.float32, -bound, bound)
        params[f"b{i}"] = jax.random.uniform(
            kb, (1, fan_out), jnp.float32, -bound, bound)
    return params


def reference_forward(x, p):
    h = jnp.maximum(x @ p["W1"] + p["b1"], 0.0)
    h = jnp.maximum(h @ p["W2"] + p["b2"], 0.0)
    h = jnp.maximum(h @ p["W3"] + p["b3"], 0.0)
    return jax.nn.sigmoid(h @ p["W4"] + p["b4"])


if __name__ == "__main__":
    key = jax.random.PRNGKey(0)
    key, kx, kp = jax.random.split(key, 3)

    batch = 8
    input_dim = 16  # stand-in for X_train_tensor.shape[1]

    x = jax.random.normal(kx, (batch, input_dim), jnp.float32)
    params = init_params(input_dim, kp)

    ref = reference_forward(x, params)

    # f32-operand path: tight check against the pure-JAX reference.
    out_f32 = jax.block_until_ready(
        improved_net_forward(x, params, use_bf16=False))
    assert out_f32.shape == (batch, 1)
    assert jnp.allclose(out_f32, ref, atol=1e-5, rtol=1e-5), "f32 mismatch"

    # Default bf16-operand path (MXU-native on v6e/v7x, halves x HBM bytes).
    out_bf16 = jax.block_until_ready(improved_net_forward(x, params))
    assert out_bf16.shape == (batch, 1)
    assert jnp.allclose(out_bf16, ref, atol=2e-2, rtol=2e-2), "bf16 mismatch"

    print("KERNEL_OK")
</pallas_src>

<mosaic_0001>
module attributes {stable_mosaic.version = 11 : i64} {
  func.func @_improved_net_kernel(%arg0: i32, %arg1: memref<128x16xf32, #tpu.memory_space<vmem>>, %arg2: memref<16x128xf32, #tpu.memory_space<vmem>>, %arg3: memref<1x128xf32, #tpu.memory_space<vmem>>, %arg4: memref<128x64xf32, #tpu.memory_space<vmem>>, %arg5: memref<1x64xf32, #tpu.memory_space<vmem>>, %arg6: memref<64x32xf32, #tpu.memory_space<vmem>>, %arg7: memref<1x32xf32, #tpu.memory_space<vmem>>, %arg8: memref<1x32xf32, #tpu.memory_space<vmem>>, %arg9: memref<1x1xf32, #tpu.memory_space<vmem>>, %arg10: memref<1x128xf32, #tpu.memory_space<vmem>>) attributes {dimension_semantics = [#tpu.dimension_semantics<parallel>], iteration_bounds = array<i64: 1>, scalar_prefetch = 0 : i64, scratch_operands = 0 : i64, tpu.core_type = #tpu.core_type<tc>, window_params = [{transform_indices = @transform_0, window_bounds = array<i64: 128, 16>}, {pipeline_mode = #tpu.pipeline_mode<synchronous>, transform_indices = @transform_1, window_bounds = array<i64: 16, 128>}, {pipeline_mode = #tpu.pipeline_mode<synchronous>, transform_indices = @transform_2, window_bounds = array<i64: 1, 128>}, {pipeline_mode = #tpu.pipeline_mode<synchronous>, transform_indices = @transform_3, window_bounds = array<i64: 128, 64>}, {pipeline_mode = #tpu.pipeline_mode<synchronous>, transform_indices = @transform_4, window_bounds = array<i64: 1, 64>}, {pipeline_mode = #tpu.pipeline_mode<synchronous>, transform_indices = @transform_5, window_bounds = array<i64: 64, 32>}, {pipeline_mode = #tpu.pipeline_mode<synchronous>, transform_indices = @transform_6, window_bounds = array<i64: 1, 32>}, {pipeline_mode = #tpu.pipeline_mode<synchronous>, transform_indices = @transform_7, window_bounds = array<i64: 1, 32>}, {pipeline_mode = #tpu.pipeline_mode<synchronous>, transform_indices = @transform_8, window_bounds = array<i64: 1, 1>}, {transform_indices = @transform_9, window_bounds = array<i64: 1, 128>}]} {
    %c0 = arith.constant 0 : index
    %c0_0 = arith.constant 0 : index
    %0 = vector.load %arg1[%c0, %c0_0] : memref<128x16xf32, #tpu.memory_space<vmem>>, vector<128x16xf32>
    %c0_1 = arith.constant 0 : index
    %c0_2 = arith.constant 0 : index
    %1 = vector.load %arg2[%c0_1, %c0_2] : memref<16x128xf32, #tpu.memory_space<vmem>>, vector<16x128xf32>
    %cst = arith.constant dense<0.000000e+00> : vector<128x128xf32>
    %2 = tpu.matmul %0, %1, %cst {dimension_numbers = #tpu.dot_dimension_numbers<[1], [0], [0], [1], [0, 0, 1, 1], [], []>} : vector<128x16xf32>, vector<16x128xf32>, vector<128x128xf32> -> vector<128x128xf32>
    %c0_3 = arith.constant 0 : index
    %c0_4 = arith.constant 0 : index
    %3 = vector.load %arg3[%c0_3, %c0_4] : memref<1x128xf32, #tpu.memory_space<vmem>>, vector<1x128xf32>
    %4 = vector.broadcast %3 : vector<1x128xf32> to vector<128x128xf32>
    %5 = arith.addf %2, %4 : vector<128x128xf32>
    %cst_5 = arith.constant 0.000000e+00 : f32
    %6 = vector.broadcast %cst_5 : f32 to vector<128x128xf32>
    %7 = arith.maximumf %5, %6 : vector<128x128xf32>
    %c0_6 = arith.constant 0 : index
    %c0_7 = arith.constant 0 : index
    %8 = vector.load %arg4[%c0_6, %c0_7] : memref<128x64xf32, #tpu.memory_space<vmem>>, vector<128x64xf32>
    %cst_8 = arith.constant dense<0.000000e+00> : vector<128x64xf32>
    %9 = tpu.matmul %7, %8, %cst_8 {dimension_numbers = #tpu.dot_dimension_numbers<[1], [0], [0], [1], [0, 0, 1, 1], [], []>} : vector<128x128xf32>, vector<128x64xf32>, vector<128x64xf32> -> vector<128x64xf32>
    %c0_9 = arith.constant 0 : index
    %c0_10 = arith.constant 0 : index
    %10 = vector.load %arg5[%c0_9, %c0_10] : memref<1x64xf32, #tpu.memory_space<vmem>>, vector<1x64xf32>
    %11 = vector.broadcast %10 : vector<1x64xf32> to vector<128x64xf32>
    %12 = arith.addf %9, %11 : vector<128x64xf32>
    %cst_11 = arith.constant 0.000000e+00 : f32
    %13 = vector.broadcast %cst_11 : f32 to vector<128x64xf32>
    %14 = arith.maximumf %12, %13 : vector<128x64xf32>
    %c0_12 = arith.constant 0 : index
    %c0_13 = arith.constant 0 : index
    %15 = vector.load %arg6[%c0_12, %c0_13] : memref<64x32xf32, #tpu.memory_space<vmem>>, vector<64x32xf32>
    %cst_14 = arith.constant dense<0.000000e+00> : vector<128x32xf32>
    %16 = tpu.matmul %14, %15, %cst_14 {dimension_numbers = #tpu.dot_dimension_numbers<[1], [0], [0], [1], [0, 0, 1, 1], [], []>} : vector<128x64xf32>, vector<64x32xf32>, vector<128x32xf32> -> vector<128x32xf32>
    %c0_15 = arith.constant 0 : index
    %c0_16 = arith.constant 0 : index
    %17 = vector.load %arg7[%c0_15, %c0_16] : memref<1x32xf32, #tpu.memory_space<vmem>>, vector<1x32xf32>
    %18 = vector.broadcast %17 : vector<1x32xf32> to vector<128x32xf32>
    %19 = arith.addf %16, %18 : vector<128x32xf32>
    %cst_17 = arith.constant 0.000000e+00 : f32
    %20 = vector.broadcast %cst_17 : f32 to vector<128x32xf32>
    %21 = arith.maximumf %19, %20 : vector<128x32xf32>
    %c0_18 = arith.constant 0 : index
    %c0_19 = arith.constant 0 : index
    %22 = vector.load %arg8[%c0_18, %c0_19] : memref<1x32xf32, #tpu.memory_space<vmem>>, vector<1x32xf32>
    %cst_20 = arith.constant dense<0.000000e+00> : vector<1x128xf32>
    %23 = tpu.matmul %22, %21, %cst_20 {dimension_numbers = #tpu.dot_dimension_numbers<[1], [1], [0], [0], [0, 0, 1, 0], [], []>} : vector<1x32xf32>, vector<128x32xf32>, vector<1x128xf32> -> vector<1x128xf32>
    %c0_21 = arith.constant 0 : index
    %c0_22 = arith.constant 0 : index
    %24 = vector.load %arg9[%c0_21, %c0_22] : memref<1x1xf32, #tpu.memory_space<vmem>>, vector<1x1xf32>
    %25 = vector.broadcast %24 : vector<1x1xf32> to vector<1x128xf32>
    %26 = arith.addf %23, %25 : vector<1x128xf32>
    %27 = arith.negf %26 : vector<1x128xf32>
    %28 = math.exp %27 : vector<1x128xf32>
    %cst_23 = arith.constant 1.000000e+00 : f32
    %29 = vector.broadcast %cst_23 : f32 to vector<1x128xf32>
    %30 = arith.addf %29, %28 : vector<1x128xf32>
    %31 = arith.divf %29, %30 : vector<1x128xf32>
    %c0_24 = arith.constant 0 : index
    %c0_25 = arith.constant 0 : index
    %32 = vector.load %arg10[%c0_24, %c0_25] : memref<1x128xf32, #tpu.memory_space<vmem>>, vector<1x128xf32>
    tpu.vector_store %arg10[%c0_24, %c0_25], %31 {strides = array<i32>} : memref<1x128xf32, #tpu.memory_space<vmem>>, vector<1x128xf32>,
    return
  }
  func.func @transform_0(%arg0: i32) -> (i32, i32) {
    %c0_i32 = arith.constant 0 : i32
    %c0_i32_0 = arith.constant 0 : i32
    return %arg0, %c0_i32 : i32, i32
  }
  func.func @transform_1(%arg0: i32) -> (i32, i32) {
    %c0_i32 = arith.constant 0 : i32
    %c0_i32_0 = arith.constant 0 : i32
    %c0_i32_1 = arith.constant 0 : i32
    return %c0_i32, %c0_i32_0 : i32, i32
  }
  func.func @transform_2(%arg0: i32) -> (i32, i32) {
    %c0_i32 = arith.constant 0 : i32
    %c0_i32_0 = arith.constant 0 : i32
    %c0_i32_1 = arith.constant 0 : i32
    return %c0_i32, %c0_i32_0 : i32, i32
  }
  func.func @transform_3(%arg0: i32) -> (i32, i32) {
    %c0_i32 = arith.constant 0 : i32
    %c0_i32_0 = arith.constant 0 : i32
    %c0_i32_1 = arith.constant 0 : i32
    return %c0_i32, %c0_i32_0 : i32, i32
  }
  func.func @transform_4(%arg0: i32) -> (i32, i32) {
    %c0_i32 = arith.constant 0 : i32
    %c0_i32_0 = arith.constant 0 : i32
    %c0_i32_1 = arith.constant 0 : i32
    return %c0_i32, %c0_i32_0 : i32, i32
  }
  func.func @transform_5(%arg0: i32) -> (i32, i32) {
    %c0_i32 = arith.constant 0 : i32
    %c0_i32_0 = arith.constant 0 : i32
    %c0_i32_1 = arith.constant 0 : i32
    return %c0_i32, %c0_i32_0 : i32, i32
  }
  func.func @transform_6(%arg0: i32) -> (i32, i32) {
    %c0_i32 = arith.constant 0 : i32
    %c0_i32_0 = arith.constant 0 : i32
    %c0_i32_1 = arith.constant 0 : i32
    return %c0_i32, %c0_i32_0 : i32, i32
  }
  func.func @transform_7(%arg0: i32) -> (i32, i32) {
    %c0_i32 = arith.constant 0 : i32
    %c0_i32_0 = arith.constant 0 : i32
    %c0_i32_1 = arith.constant 0 : i32
    return %c0_i32, %c0_i32_0 : i32, i32
  }
  func.func @transform_8(%arg0: i32) -> (i32, i32) {
    %c0_i32 = arith.constant 0 : i32
    %c0_i32_0 = arith.constant 0 : i32
    %c0_i32_1 = arith.constant 0 : i32
    return %c0_i32, %c0_i32_0 : i32, i32
  }
  func.func @transform_9(%arg0: i32) -> (i32, i32) {
    %c0_i32 = arith.constant 0 : i32
    %c0_i32_0 = arith.constant 0 : i32
    return %c0_i32, %arg0 : i32, i32
  }
}

</mosaic_0001>

<llo_original>
// kernel: tpu_custom_call.1
$region0: #{tpu_custom_call.1}
  #allocation0 [shape = 'u32[]', space=smem, size = 0x4, offset = 0x4, fixed_abs, tag = 'smem constant byte address 0x4 - core index']
  #allocation1 [shape = 'u32[144,128]{1,0:T(1,128)}', space=vmem, size = 0x12000, scoped, tag = 'internal scratch']
  #allocation2 [shape = 'f32[1,1]{1,0:T(1,128)S(1)}', space=vmem, size = 0x200, scoped, tag = 'scoped memory for tpu_custom_call.1']
  %s0 = inlined_call_operand.vmem [shape: f32[128,16], index: 0, kind: input, shape index: {}]
  %s1 = inlined_call_operand.vmem [shape: f32[16,128], index: 1, kind: input, shape index: {}]
  %s2 = inlined_call_operand.vmem [shape: f32[1,128], index: 2, kind: input, shape index: {}]
  %s3 = inlined_call_operand.vmem [shape: f32[128,64], index: 3, kind: input, shape index: {}]
  %s4 = inlined_call_operand.vmem [shape: f32[1,64], index: 4, kind: input, shape index: {}]
  %s5 = inlined_call_operand.vmem [shape: f32[64,32], index: 5, kind: input, shape index: {}]
  %s6 = inlined_call_operand.vmem [shape: f32[1,32], index: 6, kind: input, shape index: {}]
  %s7 = inlined_call_operand.vmem [shape: f32[1,32], index: 7, kind: input, shape index: {}]
  %s8 = inlined_call_operand.<no memory space> [shape: f32[1,1], index: 8, kind: input, shape index: {}]
  %s9 = inlined_call_operand.hbm [shape: f32[1,128], index: 9, kind: output, shape index: {}]
  %s10 = sld [smem:[#allocation0]]
  $region46: #{tpu_custom_call.1} parent=0
    _
  %s12 = ssub.s32 1, %s10
  %s13 = scalar_select 0, %s12, %s10
  %v14 = vstv %s8
  %15 = vst [vmem:[#allocation2] sm:$0x1] %v14
  $region1: #{tpu_custom_call.1} parent=0
    #allocation3 [shape = 'u8[512]{0}', space=vmem, size = 0x400, scoped, tag = 'output window, operand 0, single buffered']
    #allocation4 [shape = 's32[1]{0}', space=sflag, size = 0x4, scoped, tag = 'scoped memory for tpu_custom_call.1']
    %16 = vsyncpa [#allocation4], 0
    // Predicated region
    $region2: #{tpu_custom_call.1} parent=1 // pred_check
      _
    $region3: #{tpu_custom_call.1} parent=1 // pred_check_branch
      %18 = sbr.rel (0) target = $region5
    $region4: #{tpu_custom_call.1} parent=1 // pred_region
      _
    $region5: #{tpu_custom_call.1} parent=1 // pred_fallthru
      _
    // Predicated region
    $region6: #{tpu_custom_call.1} parent=1 // pred_check
      _
    $region7: #{tpu_custom_call.1} parent=1 // pred_check_branch
      %20 = sbr.rel (0) target = $region9
    $region8: #{tpu_custom_call.1} parent=1 // pred_region
      _
    $region9: #{tpu_custom_call.1} parent=1 // pred_fallthru
      _
    // Predicated region
    $region10: #{tpu_custom_call.1} parent=1 // pred_check
      _
    $region11: #{tpu_custom_call.1} parent=1 // pred_check_branch
      %22 = sbr.rel (0) target = $region13
    $region12: #{tpu_custom_call.1} parent=1 // pred_region
      _
    $region13: #{tpu_custom_call.1} parent=1 // pred_fallthru
      _
    // Predicated region
    $region14: #{tpu_custom_call.1} parent=1 // pred_check
      _
    $region15: #{tpu_custom_call.1} parent=1 // pred_check_branch
      %24 = sbr.rel (0) target = $region17
    $region16: #{tpu_custom_call.1} parent=1 // pred_region
      _
    $region17: #{tpu_custom_call.1} parent=1 // pred_fallthru
      _
    // Predicated region
    $region18: #{tpu_custom_call.1} parent=1 // pred_check
      _
    $region19: #{tpu_custom_call.1} parent=1 // pred_check_branch
      %26 = sbr.rel (0) target = $region21
    $region20: #{tpu_custom_call.1} parent=1 // pred_region
      _
    $region21: #{tpu_custom_call.1} parent=1 // pred_fallthru
      _
    // Predicated region
    $region22: #{tpu_custom_call.1} parent=1 // pred_check
      _
    $region23: #{tpu_custom_call.1} parent=1 // pred_check_branch
      %28 = sbr.rel (0) target = $region25
    $region24: #{tpu_custom_call.1} parent=1 // pred_region
      _
    $region25: #{tpu_custom_call.1} parent=1 // pred_fallthru
      _
    // Predicated region
    $region26: #{tpu_custom_call.1} parent=1 // pred_check
      _
    $region27: #{tpu_custom_call.1} parent=1 // pred_check_branch
      %30 = sbr.rel (0) target = $region29
    $region28: #{tpu_custom_call.1} parent=1 // pred_region
      _
    $region29: #{tpu_custom_call.1} parent=1 // pred_fallthru
      _
    // Predicated region
    $region30: #{tpu_custom_call.1} parent=1 // pred_check
      _
    $region31: #{tpu_custom_call.1} parent=1 // pred_check_branch
      %32 = sbr.rel (0) target = $region33
    $region32: #{tpu_custom_call.1} parent=1 // pred_region
      _
    $region33: #{tpu_custom_call.1} parent=1 // pred_fallthru
      _
    // Predicated region
    $region34: #{tpu_custom_call.1} parent=1 // pred_check
      _
    $region35: #{tpu_custom_call.1} parent=1 // pred_check_branch
      %34 = sbr.rel (0) target = $region37
    $region36: #{tpu_custom_call.1} parent=1 // pred_region
      _
    $region37: #{tpu_custom_call.1} parent=1 // pred_fallthru
      _
    %v35 = vld [vmem:[%s0] sm:$0xff]
    %v36 = vld [vmem:[%s0 + $0x8] sm:$0xff]
    %v37 = vld [vmem:[%s0 + $0x10] sm:$0xff]
    %v38 = vld [vmem:[%s0 + $0x18] sm:$0xff]
    %v39 = vld [vmem:[%s0 + $0x20] sm:$0xff]
    %v40 = vld [vmem:[%s0 + $0x28] sm:$0xff]
    %v41 = vld [vmem:[%s0 + $0x30] sm:$0xff]
    %v42 = vld [vmem:[%s0 + $0x38] sm:$0xff]
    %v43 = vld [vmem:[%s0 + $0x40] sm:$0xff]
    %v44 = vld [vmem:[%s0 + $0x48] sm:$0xff]
    %v45 = vld [vmem:[%s0 + $0x50] sm:$0xff]
    %v46 = vld [vmem:[%s0 + $0x58] sm:$0xff]
    %v47 = vld [vmem:[%s0 + $0x60] sm:$0xff]
    %v48 = vld [vmem:[%s0 + $0x68] sm:$0xff]
    %v49 = vld [vmem:[%s0 + $0x70] sm:$0xff]
    %v50 = vld [vmem:[%s0 + $0x78] sm:$0xff]
    %v51 = vld [vmem:[%s1] sm:$0xff]
    %v52 = vld [vmem:[%s1 + $0x8] sm:$0xff]
    %v53 = vld [vmem:[%s2] sm:$0x1]
    %v55 = vlaneseq
    %v56 = vshrl.u32 %v55, 7
    %v57 = vsub.s32 0, %v56
    %v58 = vrot.slane %v53, %v57
    %vm60 = vcmask 130048
    %v62 = vsel %vm60, %v35, 0
    %v65 = vsel %vm60, %v36, 0
    %v68 = vsel %vm60, %v37, 0
    %v71 = vsel %vm60, %v38, 0
    %v74 = vsel %vm60, %v39, 0
    %v77 = vsel %vm60, %v40, 0
    %v80 = vsel %vm60, %v41, 0
    %v83 = vsel %vm60, %v42, 0
    %v86 = vsel %vm60, %v43, 0
    %v89 = vsel %vm60, %v44, 0
    %v92 = vsel %vm60, %v45, 0
    %v95 = vsel %vm60, %v46, 0
    %v98 = vsel %vm60, %v47, 0
    %v101 = vsel %vm60, %v48, 0
    %v104 = vsel %vm60, %v49, 0
    %v107 = vsel %vm60, %v50, 0
    %109 = vmatprep.subr.mxu0 0.0
    %110 = vmatpush1.msra.mxu0 0.0
    %111 = vmatprep.subr.mxu0 0.0
    %112 = vmatpush1.msra.mxu0 0.0
    %113 = vmatprep.subr.mxu0 0.0
    %114 = vmatpush1.msra.mxu0 0.0
    %115 = vmatprep.subr.mxu0 0.0
    %116 = vmatpush1.msra.mxu0 0.0
    %117 = vmatprep.subr.mxu0 0.0
    %118 = vmatpush1.msra.mxu0 0.0
    %119 = vmatprep.subr.mxu0 0.0
    %120 = vmatpush1.msra.mxu0 0.0
    %121 = vmatprep.subr.mxu0 0.0
    %122 = vmatpush1.msra.mxu0 0.0
    %123 = vmatprep.subr.mxu0 0.0
    %124 = vmatpush1.msra.mxu0 0.0
    %125 = vmatprep.subr.mxu0 0.0
    %126 = vmatpush1.msra.mxu0 0.0
    %127 = vmatprep.subr.mxu0 0.0
    %128 = vmatpush1.msra.mxu0 0.0
    %129 = vmatprep.subr.mxu0 0.0
    %130 = vmatpush1.msra.mxu0 0.0
    %131 = vmatprep.subr.mxu0 0.0
    %132 = vmatpush1.msra.mxu0 0.0
    %133 = vmatprep.subr.mxu0 0.0
    %134 = vmatpush1.msra.mxu0 0.0
    %135 = vmatprep.subr.mxu0 0.0
    %136 = vmatpush1.msra.mxu0 0.0
    %137 = vmatprep.subr.mxu0 0.0
    %138 = vmatpush1.msra.mxu0 %v52
    %139 = vmatprep.subr.mxu0 0.0
    %140 = vmatpush1.msra.mxu0 %v51
    %141 = vmatprep.subr.mxu0 0.0
    %142 = vmatpush2.msra.mxu0 0.0
    %143 = vmatprep.subr.mxu0 0.0
    %144 = vmatpush2.msra.mxu0 0.0
    %145 = vmatprep.subr.mxu0 0.0
    %146 = vmatpush2.msra.mxu0 0.0
    %147 = vmatprep.subr.mxu0 0.0
    %148 = vmatpush2.msra.mxu0 0.0
    %149 = vmatprep.subr.mxu0 0.0
    %150 = vmatpush2.msra.mxu0 0.0
    %151 = vmatprep.subr.mxu0 0.0
    %152 = vmatpush2.msra.mxu0 0.0
    %153 = vmatprep.subr.mxu0 0.0
    %154 = vmatpush2.msra.mxu0 0.0
    %155 = vmatprep.subr.mxu0 0.0
    %156 = vmatpush2.msra.mxu0 0.0
    %157 = vmatprep.subr.mxu0 0.0
    %158 = vmatpush2.msra.mxu0 0.0
    %159 = vmatprep.subr.mxu0 0.0
    %160 = vmatpush2.msra.mxu0 0.0
    %161 = vmatprep.subr.mxu0 0.0
    %162 = vmatpush2.msra.mxu0 0.0
    %163 = vmatprep.subr.mxu0 0.0
    %164 = vmatpush2.msra.mxu0 0.0
    %165 = vmatprep.subr.mxu0 0.0
    %166 = vmatpush2.msra.mxu0 0.0
    %167 = vmatprep.subr.mxu0 0.0
    %168 = vmatpush2.msra.mxu0 0.0
    %169 = vmatprep.subr.mxu0 0.0
    %170 = vmatpush2.msra.mxu0 0.0
    %171 = vmatprep.subr.mxu0 0.0
    %172 = vmatpush2.msra.mxu0 0.0
    %173 = vmatprep.mubr.f32.mxu0 0.0
    %174 = vmatmul.mubr.f32.gmra.mxu0 %v62
    %v175 = vpop.f32.mrf.mxu0
    %v176 = vadd.f32 %v58, %v175
    %v177 = vpop.f32.mrf.mxu0
    %178 = vmatprep.mubr.f32.mxu0 0.0
    %179 = vmatmul.mubr.f32.gmra.mxu0 %v65
    %v180 = vpop.f32.mrf.mxu0
    %v181 = vadd.f32 %v58, %v180
    %v182 = vpop.f32.mrf.mxu0
    %183 = vmatprep.mubr.f32.mxu0 0.0
    %184 = vmatmul.mubr.f32.gmra.mxu0 %v68
    %v185 = vpop.f32.mrf.mxu0
    %v186 = vadd.f32 %v58, %v185
    %v187 = vpop.f32.mrf.mxu0
    %188 = vmatprep.mubr.f32.mxu0 0.0
    %189 = vmatmul.mubr.f32.gmra.mxu0 %v71
    %v190 = vpop.f32.mrf.mxu0
    %v191 = vadd.f32 %v58, %v190
    %v192 = vpop.f32.mrf.mxu0
    %193 = vmatprep.mubr.f32.mxu0 0.0
    %194 = vmatmul.mubr.f32.gmra.mxu0 %v74
    %v195 = vpop.f32.mrf.mxu0
    %v196 = vadd.f32 %v58, %v195
    %v197 = vpop.f32.mrf.mxu0
    %198 = vmatprep.mubr.f32.mxu0 0.0
    %199 = vmatmul.mubr.f32.gmra.mxu0 %v77
    %v200 = vpop.f32.mrf.mxu0
    %v201 = vadd.f32 %v58, %v200
    %v202 = vpop.f32.mrf.mxu0
    %203 = vmatprep.mubr.f32.mxu0 0.0
    %204 = vmatmul.mubr.f32.gmra.mxu0 %v80
    %v205 = vpop.f32.mrf.mxu0
    %v206 = vadd.f32 %v58, %v205
    %v207 = vpop.f32.mrf.mxu0
    %208 = vmatprep.mubr.f32.mxu0 0.0
    %209 = vmatmul.mubr.f32.gmra.mxu0 %v83
    %v210 = vpop.f32.mrf.mxu0
    %v211 = vadd.f32 %v58, %v210
    %v212 = vpop.f32.mrf.mxu0
    %213 = vmatprep.mubr.f32.mxu0 0.0
    %214 = vmatmul.mubr.f32.gmra.mxu0 %v86
    %v215 = vpop.f32.mrf.mxu0
    %v216 = vadd.f32 %v58, %v215
    %v217 = vpop.f32.mrf.mxu0
    %218 = vmatprep.mubr.f32.mxu0 0.0
    %219 = vmatmul.mubr.f32.gmra.mxu0 %v89
    %v220 = vpop.f32.mrf.mxu0
    %v221 = vadd.f32 %v58, %v220
    %v222 = vpop.f32.mrf.mxu0
    %223 = vmatprep.mubr.f32.mxu0 0.0
    %224 = vmatmul.mubr.f32.gmra.mxu0 %v92
    %v225 = vpop.f32.mrf.mxu0
    %v226 = vadd.f32 %v58, %v225
    %v227 = vpop.f32.mrf.mxu0
    %228 = vmatprep.mubr.f32.mxu0 0.0
    %229 = vmatmul.mubr.f32.gmra.mxu0 %v95
    %v230 = vpop.f32.mrf.mxu0
    %v231 = vadd.f32 %v58, %v230
    %v232 = vpop.f32.mrf.mxu0
    %233 = vmatprep.mubr.f32.mxu0 0.0
    %234 = vmatmul.mubr.f32.gmra.mxu0 %v98
    %v235 = vpop.f32.mrf.mxu0
    %v236 = vadd.f32 %v58, %v235
    %v237 = vpop.f32.mrf.mxu0
    %238 = vmatprep.mubr.f32.mxu0 0.0
    %239 = vmatmul.mubr.f32.gmra.mxu0 %v101
    %v240 = vpop.f32.mrf.mxu0
    %v241 = vadd.f32 %v58, %v240
    %v242 = vpop.f32.mrf.mxu0
    %243 = vmatprep.mubr.f32.mxu0 0.0
    %244 = vmatmul.mubr.f32.gmra.mxu0 %v104
    %v245 = vpop.f32.mrf.mxu0
    %v246 = vadd.f32 %v58, %v245
    %v247 = vpop.f32.mrf.mxu0
    %248 = vmatprep.mubr.f32.mxu0 0.0
    %249 = vmatmul.mubr.f32.gmra.mxu0 %v107
    %v250 = vpop.f32.mrf.mxu0
    %v251 = vadd.f32 %v58, %v250
    %v252 = vpop.f32.mrf.mxu0
    %253 = vdwg.mxu0
    %v254 = vmax.f32 %v176, 0.0
    %v255 = vmax.f32 %v181, 0.0
    %v256 = vmax.f32 %v186, 0.0
    %v257 = vmax.f32 %v191, 0.0
    %v258 = vmax.f32 %v196, 0.0
    %v259 = vmax.f32 %v201, 0.0
    %v260 = vmax.f32 %v206, 0.0
    %v261 = vmax.f32 %v211, 0.0
    %v262 = vmax.f32 %v216, 0.0
    %v263 = vmax.f32 %v221, 0.0
    %v264 = vmax.f32 %v226, 0.0
    %v265 = vmax.f32 %v231, 0.0
    %v266 = vmax.f32 %v236, 0.0
    %v267 = vmax.f32 %v241, 0.0
    %v268 = vmax.f32 %v246, 0.0
    %v269 = vmax.f32 %v251, 0.0
    %v270 = vld [vmem:[%s3] sm:$0xff]
    %v271 = vld [vmem:[%s3 + $0x8] sm:$0xff]
    %v272 = vld [vmem:[%s3 + $0x10] sm:$0xff]
    %v273 = vld [vmem:[%s3 + $0x18] sm:$0xff]
    %v274 = vld [vmem:[%s3 + $0x20] sm:$0xff]
    %v275 = vld [vmem:[%s3 + $0x28] sm:$0xff]
    %v276 = vld [vmem:[%s3 + $0x30] sm:$0xff]
    %v277 = vld [vmem:[%s3 + $0x38] sm:$0xff]
    %v278 = vld [vmem:[%s3 + $0x40] sm:$0xff]
    %v279 = vld [vmem:[%s3 + $0x48] sm:$0xff]
    %v280 = vld [vmem:[%s3 + $0x50] sm:$0xff]
    %v281 = vld [vmem:[%s3 + $0x58] sm:$0xff]
    %v282 = vld [vmem:[%s3 + $0x60] sm:$0xff]
    %v283 = vld [vmem:[%s3 + $0x68] sm:$0xff]
    %v284 = vld [vmem:[%s3 + $0x70] sm:$0xff]
    %v285 = vld [vmem:[%s3 + $0x78] sm:$0xff]
    %v286 = vld [vmem:[%s4] sm:$0x1]
    %v288 = vlaneseq
    %v289 = vshrl.u32 %v288, 7
    %v290 = vsub.s32 0, %v289
    %v291 = vrot.slane %v286, %v290
    %293 = vmatprep.subr.mxu0 0.0
    %294 = vmatpush1.msra.mxu0 %v285
    %295 = vmatprep.subr.mxu0 0.0
    %296 = vmatpush1.msra.mxu0 %v284
    %297 = vmatprep.subr.mxu0 0.0
    %298 = vmatpush1.msra.mxu0 %v283
    %299 = vmatprep.subr.mxu0 0.0
    %300 = vmatpush1.msra.mxu0 %v282
    %301 = vmatprep.subr.mxu0 0.0
    %302 = vmatpush1.msra.mxu0 %v281
    %303 = vmatprep.subr.mxu0 0.0
    %304 = vmatpush1.msra.mxu0 %v280
    %305 = vmatprep.subr.mxu0 0.0
    %306 = vmatpush1.msra.mxu0 %v279
    %307 = vmatprep.subr.mxu0 0.0
    %308 = vmatpush1.msra.mxu0 %v278
    %309 = vmatprep.subr.mxu0 0.0
    %310 = vmatpush1.msra.mxu0 %v277
    %311 = vmatprep.subr.mxu0 0.0
    %312 = vmatpush1.msra.mxu0 %v276
    %313 = vmatprep.subr.mxu0 0.0
    %314 = vmatpush1.msra.mxu0 %v275
    %315 = vmatprep.subr.mxu0 0.0
    %316 = vmatpush1.msra.mxu0 %v274
    %317 = vmatprep.subr.mxu0 0.0
    %318 = vmatpush1.msra.mxu0 %v273
    %319 = vmatprep.subr.mxu0 0.0
    %320 = vmatpush1.msra.mxu0 %v272
    %321 = vmatprep.subr.mxu0 0.0
    %322 = vmatpush1.msra.mxu0 %v271
    %323 = vmatprep.subr.mxu0 0.0
    %324 = vmatpush1.msra.mxu0 %v270
    %325 = vmatprep.subr.mxu0 0.0
    %326 = vmatpush2.msra.mxu0 0.0
    %327 = vmatprep.subr.mxu0 0.0
    %328 = vmatpush2.msra.mxu0 0.0
    %329 = vmatprep.subr.mxu0 0.0
    %330 = vmatpush2.msra.mxu0 0.0
    %331 = vmatprep.subr.mxu0 0.0
    %332 = vmatpush2.msra.mxu0 0.0
    %333 = vmatprep.subr.mxu0 0.0
    %334 = vmatpush2.msra.mxu0 0.0
    %335 = vmatprep.subr.mxu0 0.0
    %336 = vmatpush2.msra.mxu0 0.0
    %337 = vmatprep.subr.mxu0 0.0
    %338 = vmatpush2.msra.mxu0 0.0
    %339 = vmatprep.subr.mxu0 0.0
    %340 = vmatpush2.msra.mxu0 0.0
    %341 = vmatprep.subr.mxu0 0.0
    %342 = vmatpush2.msra.mxu0 0.0
    %343 = vmatprep.subr.mxu0 0.0
    %344 = vmatpush2.msra.mxu0 0.0
    %345 = vmatprep.subr.mxu0 0.0
    %346 = vmatpush2.msra.mxu0 0.0
    %347 = vmatprep.subr.mxu0 0.0
    %348 = vmatpush2.msra.mxu0 0.0
    %349 = vmatprep.subr.mxu0 0.0
    %350 = vmatpush2.msra.mxu0 0.0
    %351 = vmatprep.subr.mxu0 0.0
    %352 = vmatpush2.msra.mxu0 0.0
    %353 = vmatprep.subr.mxu0 0.0
    %354 = vmatpush2.msra.mxu0 0.0
    %355 = vmatprep.subr.mxu0 0.0
    %356 = vmatpush2.msra.mxu0 0.0
    %357 = vmatprep.mubr.f32.mxu0 0.0
    %358 = vmatmul.mubr.f32.gmra.mxu0 %v254
    %v359 = vpop.f32.mrf.mxu0
    %v360 = vadd.f32 %v291, %v359
    %v361 = vpop.f32.mrf.mxu0
    %362 = vmatprep.mubr.f32.mxu0 0.0
    %363 = vmatmul.mubr.f32.gmra.mxu0 %v255
    %v364 = vpop.f32.mrf.mxu0
    %v365 = vadd.f32 %v291, %v364
    %v366 = vpop.f32.mrf.mxu0
    %367 = vmatprep.mubr.f32.mxu0 0.0
    %368 = vmatmul.mubr.f32.gmra.mxu0 %v256
    %v369 = vpop.f32.mrf.mxu0
    %v370 = vadd.f32 %v291, %v369
    %v371 = vpop.f32.mrf.mxu0
    %372 = vmatprep.mubr.f32.mxu0 0.0
    %373 = vmatmul.mubr.f32.gmra.mxu0 %v257
    %v374 = vpop.f32.mrf.mxu0
    %v375 = vadd.f32 %v291, %v374
    %v376 = vpop.f32.mrf.mxu0
    %377 = vmatprep.mubr.f32.mxu0 0.0
    %378 = vmatmul.mubr.f32.gmra.mxu0 %v258
    %v379 = vpop.f32.mrf.mxu0
    %v380 = vadd.f32 %v291, %v379
    %v381 = vpop.f32.mrf.mxu0
    %382 = vmatprep.mubr.f32.mxu0 0.0
    %383 = vmatmul.mubr.f32.gmra.mxu0 %v259
    %v384 = vpop.f32.mrf.mxu0
    %v385 = vadd.f32 %v291, %v384
    %v386 = vpop.f32.mrf.mxu0
    %387 = vmatprep.mubr.f32.mxu0 0.0
    %388 = vmatmul.mubr.f32.gmra.mxu0 %v260
    %v389 = vpop.f32.mrf.mxu0
    %v390 = vadd.f32 %v291, %v389
    %v391 = vpop.f32.mrf.mxu0
    %392 = vmatprep.mubr.f32.mxu0 0.0
    %393 = vmatmul.mubr.f32.gmra.mxu0 %v261
    %v394 = vpop.f32.mrf.mxu0
    %v395 = vadd.f32 %v291, %v394
    %v396 = vpop.f32.mrf.mxu0
    %397 = vmatprep.mubr.f32.mxu0 0.0
    %398 = vmatmul.mubr.f32.gmra.mxu0 %v262
    %v399 = vpop.f32.mrf.mxu0
    %v400 = vadd.f32 %v291, %v399
    %v401 = vpop.f32.mrf.mxu0
    %402 = vmatprep.mubr.f32.mxu0 0.0
    %403 = vmatmul.mubr.f32.gmra.mxu0 %v263
    %v404 = vpop.f32.mrf.mxu0
    %v405 = vadd.f32 %v291, %v404
    %v406 = vpop.f32.mrf.mxu0
    %407 = vmatprep.mubr.f32.mxu0 0.0
    %408 = vmatmul.mubr.f32.gmra.mxu0 %v264
    %v409 = vpop.f32.mrf.mxu0
    %v410 = vadd.f32 %v291, %v409
    %v411 = vpop.f32.mrf.mxu0
    %412 = vmatprep.mubr.f32.mxu0 0.0
    %413 = vmatmul.mubr.f32.gmra.mxu0 %v265
    %v414 = vpop.f32.mrf.mxu0
    %v415 = vadd.f32 %v291, %v414
    %v416 = vpop.f32.mrf.mxu0
    %417 = vmatprep.mubr.f32.mxu0 0.0
    %418 = vmatmul.mubr.f32.gmra.mxu0 %v266
    %v419 = vpop.f32.mrf.mxu0
    %v420 = vadd.f32 %v291, %v419
    %v421 = vpop.f32.mrf.mxu0
    %422 = vmatprep.mubr.f32.mxu0 0.0
    %423 = vmatmul.mubr.f32.gmra.mxu0 %v267
    %v424 = vpop.f32.mrf.mxu0
    %v425 = vadd.f32 %v291, %v424
    %v426 = vpop.f32.mrf.mxu0
    %427 = vmatprep.mubr.f32.mxu0 0.0
    %428 = vmatmul.mubr.f32.gmra.mxu0 %v268
    %v429 = vpop.f32.mrf.mxu0
    %v430 = vadd.f32 %v291, %v429
    %v431 = vpop.f32.mrf.mxu0
    %432 = vmatprep.mubr.f32.mxu0 0.0
    %433 = vmatmul.mubr.f32.gmra.mxu0 %v269
    %v434 = vpop.f32.mrf.mxu0
    %v435 = vadd.f32 %v291, %v434
    %v436 = vpop.f32.mrf.mxu0
    %437 = vdwg.mxu0
    %v438 = vmax.f32 %v360, 0.0
    %v439 = vmax.f32 %v365, 0.0
    %v440 = vmax.f32 %v370, 0.0
    %v441 = vmax.f32 %v375, 0.0
    %v442 = vmax.f32 %v380, 0.0
    %v443 = vmax.f32 %v385, 0.0
    %v444 = vmax.f32 %v390, 0.0
    %v445 = vmax.f32 %v395, 0.0
    %v446 = vmax.f32 %v400, 0.0
    %v447 = vmax.f32 %v405, 0.0
    %v448 = vmax.f32 %v410, 0.0
    %v449 = vmax.f32 %v415, 0.0
    %v450 = vmax.f32 %v420, 0.0
    %v451 = vmax.f32 %v425, 0.0
    %v452 = vmax.f32 %v430, 0.0
    %v453 = vmax.f32 %v435, 0.0
    %v454 = vld [vmem:[%s5] sm:$0xff]
    %v455 = vld [vmem:[%s5 + $0x8] sm:$0xff]
    %v456 = vld [vmem:[%s5 + $0x10] sm:$0xff]
    %v457 = vld [vmem:[%s5 + $0x18] sm:$0xff]
    %v458 = vld [vmem:[%s5 + $0x20] sm:$0xff]
    %v459 = vld [vmem:[%s5 + $0x28] sm:$0xff]
    %v460 = vld [vmem:[%s5 + $0x30] sm:$0xff]
    %v461 = vld [vmem:[%s5 + $0x38] sm:$0xff]
    %v462 = vld [vmem:[%s6] sm:$0x1]
    %v464 = vlaneseq
    %v465 = vshrl.u32 %v464, 7
    %v466 = vsub.s32 0, %v465
    %v467 = vrot.slane %v462, %v466
    %vm469 = vcmask 523264
    %v471 = vsel %vm469, %v438, 0
    %v474 = vsel %vm469, %v439, 0
    %v477 = vsel %vm469, %v440, 0
    %v480 = vsel %vm469, %v441, 0
    %v483 = vsel %vm469, %v442, 0
    %v486 = vsel %vm469, %v443, 0
    %v489 = vsel %vm469, %v444, 0
    %v492 = vsel %vm469, %v445, 0
    %v495 = vsel %vm469, %v446, 0
    %v498 = vsel %vm469, %v447, 0
    %v501 = vsel %vm469, %v448, 0
    %v504 = vsel %vm469, %v449, 0
    %v507 = vsel %vm469, %v450, 0
    %v510 = vsel %vm469, %v451, 0
    %v513 = vsel %vm469, %v452, 0
    %v516 = vsel %vm469, %v453, 0
    %518 = vmatprep.subr.mxu0 0.0
    %519 = vmatpush1.msra.mxu0 0.0
    %520 = vmatprep.subr.mxu0 0.0
    %521 = vmatpush1.msra.mxu0 0.0
    %522 = vmatprep.subr.mxu0 0.0
    %523 = vmatpush1.msra.mxu0 0.0
    %524 = vmatprep.subr.mxu0 0.0
    %525 = vmatpush1.msra.mxu0 0.0
    %526 = vmatprep.subr.mxu0 0.0
    %527 = vmatpush1.msra.mxu0 0.0
    %528 = vmatprep.subr.mxu0 0.0
    %529 = vmatpush1.msra.mxu0 0.0
    %530 = vmatprep.subr.mxu0 0.0
    %531 = vmatpush1.msra.mxu0 0.0
    %532 = vmatprep.subr.mxu0 0.0
    %533 = vmatpush1.msra.mxu0 0.0
    %534 = vmatprep.subr.mxu0 0.0
    %535 = vmatpush1.msra.mxu0 %v461
    %536 = vmatprep.subr.mxu0 0.0
    %537 = vmatpush1.msra.mxu0 %v460
    %538 = vmatprep.subr.mxu0 0.0
    %539 = vmatpush1.msra.mxu0 %v459
    %540 = vmatprep.subr.mxu0 0.0
    %541 = vmatpush1.msra.mxu0 %v458
    %542 = vmatprep.subr.mxu0 0.0
    %543 = vmatpush1.msra.mxu0 %v457
    %544 = vmatprep.subr.mxu0 0.0
    %545 = vmatpush1.msra.mxu0 %v456
    %546 = vmatprep.subr.mxu0 0.0
    %547 = vmatpush1.msra.mxu0 %v455
    %548 = vmatprep.subr.mxu0 0.0
    %549 = vmatpush1.msra.mxu0 %v454
    %550 = vmatprep.subr.mxu0 0.0
    %551 = vmatpush2.msra.mxu0 0.0
    %552 = vmatprep.subr.mxu0 0.0
    %553 = vmatpush2.msra.mxu0 0.0
    %554 = vmatprep.subr.mxu0 0.0
    %555 = vmatpush2.msra.mxu0 0.0
    %556 = vmatprep.subr.mxu0 0.0
    %557 = vmatpush2.msra.mxu0 0.0
    %558 = vmatprep.subr.mxu0 0.0
    %559 = vmatpush2.msra.mxu0 0.0
    %560 = vmatprep.subr.mxu0 0.0
    %561 = vmatpush2.msra.mxu0 0.0
    %562 = vmatprep.subr.mxu0 0.0
    %563 = vmatpush2.msra.mxu0 0.0
    %564 = vmatprep.subr.mxu0 0.0
    %565 = vmatpush2.msra.mxu0 0.0
    %566 = vmatprep.subr.mxu0 0.0
    %567 = vmatpush2.msra.mxu0 0.0
    %568 = vmatprep.subr.mxu0 0.0
    %569 = vmatpush2.msra.mxu0 0.0
    %570 = vmatprep.subr.mxu0 0.0
    %571 = vmatpush2.msra.mxu0 0.0
    %572 = vmatprep.subr.mxu0 0.0
    %573 = vmatpush2.msra.mxu0 0.0
    %574 = vmatprep.subr.mxu0 0.0
    %575 = vmatpush2.msra.mxu0 0.0
    %576 = vmatprep.subr.mxu0 0.0
    %577 = vmatpush2.msra.mxu0 0.0
    %578 = vmatprep.subr.mxu0 0.0
    %579 = vmatpush2.msra.mxu0 0.0
    %580 = vmatprep.subr.mxu0 0.0
    %581 = vmatpush2.msra.mxu0 0.0
    %582 = vmatprep.mubr.f32.mxu0 0.0
    %583 = vmatmul.mubr.f32.gmra.mxu0 %v471
    %v584 = vpop.f32.mrf.mxu0
    %v585 = vadd.f32 %v467, %v584
    %v586 = vpop.f32.mrf.mxu0
    %587 = vmatprep.mubr.f32.mxu0 0.0
    %588 = vmatmul.mubr.f32.gmra.mxu0 %v474
    %v589 = vpop.f32.mrf.mxu0
    %v590 = vadd.f32 %v467, %v589
    %v591 = vpop.f32.mrf.mxu0
    %592 = vmatprep.mubr.f32.mxu0 0.0
    %593 = vmatmul.mubr.f32.gmra.mxu0 %v477
    %v594 = vpop.f32.mrf.mxu0
    %v595 = vadd.f32 %v467, %v594
    %v596 = vpop.f32.mrf.mxu0
    %597 = vmatprep.mubr.f32.mxu0 0.0
    %598 = vmatmul.mubr.f32.gmra.mxu0 %v480
    %v599 = vpop.f32.mrf.mxu0
    %v600 = vadd.f32 %v467, %v599
    %v601 = vpop.f32.mrf.mxu0
    %602 = vmatprep.mubr.f32.mxu0 0.0
    %603 = vmatmul.mubr.f32.gmra.mxu0 %v483
    %v604 = vpop.f32.mrf.mxu0
    %v605 = vadd.f32 %v467, %v604
    %v606 = vpop.f32.mrf.mxu0
    %607 = vmatprep.mubr.f32.mxu0 0.0
    %608 = vmatmul.mubr.f32.gmra.mxu0 %v486
    %v609 = vpop.f32.mrf.mxu0
    %v610 = vadd.f32 %v467, %v609
    %v611 = vpop.f32.mrf.mxu0
    %612 = vmatprep.mubr.f32.mxu0 0.0
    %613 = vmatmul.mubr.f32.gmra.mxu0 %v489
    %v614 = vpop.f32.mrf.mxu0
    %v615 = vadd.f32 %v467, %v614
    %v616 = vpop.f32.mrf.mxu0
    %617 = vmatprep.mubr.f32.mxu0 0.0
    %618 = vmatmul.mubr.f32.gmra.mxu0 %v492
    %v619 = vpop.f32.mrf.mxu0
    %v620 = vadd.f32 %v467, %v619
    %v621 = vpop.f32.mrf.mxu0
    %622 = vmatprep.mubr.f32.mxu0 0.0
    %623 = vmatmul.mubr.f32.gmra.mxu0 %v495
    %v624 = vpop.f32.mrf.mxu0
    %v625 = vadd.f32 %v467, %v624
    %v626 = vpop.f32.mrf.mxu0
    %627 = vmatprep.mubr.f32.mxu0 0.0
    %628 = vmatmul.mubr.f32.gmra.mxu0 %v498
    %v629 = vpop.f32.mrf.mxu0
    %v630 = vadd.f32 %v467, %v629
    %v631 = vpop.f32.mrf.mxu0
    %632 = vmatprep.mubr.f32.mxu0 0.0
    %633 = vmatmul.mubr.f32.gmra.mxu0 %v501
    %v634 = vpop.f32.mrf.mxu0
    %v635 = vadd.f32 %v467, %v634
    %v636 = vpop.f32.mrf.mxu0
    %637 = vmatprep.mubr.f32.mxu0 0.0
    %638 = vmatmul.mubr.f32.gmra.mxu0 %v504
    %v639 = vpop.f32.mrf.mxu0
    %v640 = vadd.f32 %v467, %v639
    %v641 = vpop.f32.mrf.mxu0
    %642 = vmatprep.mubr.f32.mxu0 0.0
    %643 = vmatmul.mubr.f32.gmra.mxu0 %v507
    %v644 = vpop.f32.mrf.mxu0
    %v645 = vadd.f32 %v467, %v644
    %v646 = vpop.f32.mrf.mxu0
    %647 = vmatprep.mubr.f32.mxu0 0.0
    %648 = vmatmul.mubr.f32.gmra.mxu0 %v510
    %v649 = vpop.f32.mrf.mxu0
    %v650 = vadd.f32 %v467, %v649
    %v651 = vpop.f32.mrf.mxu0
    %652 = vmatprep.mubr.f32.mxu0 0.0
    %653 = vmatmul.mubr.f32.gmra.mxu0 %v513
    %v654 = vpop.f32.mrf.mxu0
    %v655 = vadd.f32 %v467, %v654
    %v656 = vpop.f32.mrf.mxu0
    %657 = vmatprep.mubr.f32.mxu0 0.0
    %658 = vmatmul.mubr.f32.gmra.mxu0 %v516
    %v659 = vpop.f32.mrf.mxu0
    %v660 = vadd.f32 %v467, %v659
    %v661 = vpop.f32.mrf.mxu0
    %662 = vdwg.mxu0
    %v663 = vmax.f32 %v585, 0.0
    %v664 = vmax.f32 %v590, 0.0
    %v665 = vmax.f32 %v595, 0.0
    %v666 = vmax.f32 %v600, 0.0
    %v667 = vmax.f32 %v605, 0.0
    %v668 = vmax.f32 %v610, 0.0
    %v669 = vmax.f32 %v615, 0.0
    %v670 = vmax.f32 %v620, 0.0
    %v671 = vmax.f32 %v625, 0.0
    %v672 = vmax.f32 %v630, 0.0
    %v673 = vmax.f32 %v635, 0.0
    %v674 = vmax.f32 %v640, 0.0
    %v675 = vmax.f32 %v645, 0.0
    %v676 = vmax.f32 %v650, 0.0
    %v677 = vmax.f32 %v655, 0.0
    %v678 = vmax.f32 %v660, 0.0
    %v679 = vld [vmem:[%s7] sm:$0x1]
    %v680 = vld [vmem:[#allocation2] sm:$0x1]
    %682 = vset.pattern.permute.xlu0 0
    %683 = vperm.xlu0 %682, %v680
    %v684 = vpop.permute.xlu0 %683
    %v686 = vlaneseq
    %v687 = vshrl.u32 %v686, 7
    %v688 = vsub.s32 0, %v687
    %v689 = vrot.slane %v684, %v688
    %vm690 = vcmask 261120
    %v692 = vsel %vm690, %v679, 0
    %v695 = vsel %vm690, %v663, 0
    %v698 = vsel %vm690, %v664, 0
    %v701 = vsel %vm690, %v665, 0
    %v704 = vsel %vm690, %v666, 0
    %v707 = vsel %vm690, %v667, 0
    %v710 = vsel %vm690, %v668, 0
    %v713 = vsel %vm690, %v669, 0
    %v716 = vsel %vm690, %v670, 0
    %v719 = vsel %vm690, %v671, 0
    %v722 = vsel %vm690, %v672, 0
    %v725 = vsel %vm690, %v673, 0
    %v728 = vsel %vm690, %v674, 0
    %v731 = vsel %vm690, %v675, 0
    %v734 = vsel %vm690, %v676, 0
    %v737 = vsel %vm690, %v677, 0
    %v740 = vsel %vm690, %v678, 0
    %742 = vmatprep.subr.mxu0 0.0
    %743 = vmatpush1.xpose.msra.mxu0 %v740
    %744 = vmatprep.subr.mxu0 0.0
    %745 = vmatpush1.xpose.msra.mxu0 %v737
    %746 = vmatprep.subr.mxu0 0.0
    %747 = vmatpush1.xpose.msra.mxu0 %v734
    %748 = vmatprep.subr.mxu0 0.0
    %749 = vmatpush1.xpose.msra.mxu0 %v731
    %750 = vmatprep.subr.mxu0 0.0
    %751 = vmatpush1.xpose.msra.mxu0 %v728
    %752 = vmatprep.subr.mxu0 0.0
    %753 = vmatpush1.xpose.msra.mxu0 %v725
    %754 = vmatprep.subr.mxu0 0.0
    %755 = vmatpush1.xpose.msra.mxu0 %v722
    %756 = vmatprep.subr.mxu0 0.0
    %757 = vmatpush1.xpose.msra.mxu0 %v719
    %758 = vmatprep.subr.mxu0 0.0
    %759 = vmatpush1.xpose.msra.mxu0 %v716
    %760 = vmatprep.subr.mxu0 0.0
    %761 = vmatpush1.xpose.msra.mxu0 %v713
    %762 = vmatprep.subr.mxu0 0.0
    %763 = vmatpush1.xpose.msra.mxu0 %v710
    %764 = vmatprep.subr.mxu0 0.0
    %765 = vmatpush1.xpose.msra.mxu0 %v707
    %766 = vmatprep.subr.mxu0 0.0
    %767 = vmatpush1.xpose.msra.mxu0 %v704
    %768 = vmatprep.subr.mxu0 0.0
    %769 = vmatpush1.xpose.msra.mxu0 %v701
    %770 = vmatprep.subr.mxu0 0.0
    %771 = vmatpush1.xpose.msra.mxu0 %v698
    %772 = vmatprep.subr.mxu0 0.0
    %773 = vmatpush1.xpose.msra.mxu0 %v695
    %774 = vmatprep.subr.mxu0 0.0
    %775 = vmatpush2.xpose.msra.mxu0 0.0
    %776 = vmatprep.subr.mxu0 0.0
    %777 = vmatpush2.xpose.msra.mxu0 0.0
    %778 = vmatprep.subr.mxu0 0.0
    %779 = vmatpush2.xpose.msra.mxu0 0.0
    %780 = vmatprep.subr.mxu0 0.0
    %781 = vmatpush2.xpose.msra.mxu0 0.0
    %782 = vmatprep.subr.mxu0 0.0
    %783 = vmatpush2.xpose.msra.mxu0 0.0
    %784 = vmatprep.subr.mxu0 0.0
    %785 = vmatpush2.xpose.msra.mxu0 0.0
    %786 = vmatprep.subr.mxu0 0.0
    %787 = vmatpush2.xpose.msra.mxu0 0.0
    %788 = vmatprep.subr.mxu0 0.0
    %789 = vmatpush2.xpose.msra.mxu0 0.0
    %790 = vmatprep.subr.mxu0 0.0
    %791 = vmatpush2.xpose.msra.mxu0 0.0
    %792 = vmatprep.subr.mxu0 0.0
    %793 = vmatpush2.xpose.msra.mxu0 0.0
    %794 = vmatprep.subr.mxu0 0.0
    %795 = vmatpush2.xpose.msra.mxu0 0.0
    %796 = vmatprep.subr.mxu0 0.0
    %797 = vmatpush2.xpose.msra.mxu0 0.0
    %798 = vmatprep.subr.mxu0 0.0
    %799 = vmatpush2.xpose.msra.mxu0 0.0
    %800 = vmatprep.subr.mxu0 0.0
    %801 = vmatpush2.xpose.msra.mxu0 0.0
    %802 = vmatprep.subr.mxu0 0.0
    %803 = vmatpush2.xpose.msra.mxu0 0.0
    %804 = vmatprep.subr.mxu0 0.0
    %805 = vmatpush2.xpose.msra.mxu0 0.0
    %806 = vmatprep.mubr.f32.mxu0 0.0
    %807 = vmatmul.mubr.f32.gmra.mxu0 %v692
    %v808 = vpop.f32.mrf.mxu0
    %v809 = vadd.f32 %v689, %v808
    %v810 = vpop.f32.mrf.mxu0
    %811 = vdwg.mxu0
    %v812 = vxor.u32 %v809, 2147483648
    %v813 = vmul.f32 %v812, 1.442695
    %v814 = vpow.pop %v813
    %v815 = vadd.f32 %v814, 1.0
    %v816 = vrcp.pop %v815
    %v817 = vmul.f32 1.0, %v816
    %818 = vst [vmem:[#allocation3] sm:$0x1] %v817
    // Predicated region
    $region38: #{tpu_custom_call.1} parent=1 // pred_check
      _
    $region39: #{tpu_custom_call.1} parent=1 // pred_check_branch
      %820 = sbr.rel (0) target = $region41
    $region40: #{tpu_custom_call.1} parent=1 // pred_region
      %s822 = ssub.s32 16, 16
      %823 = vsyncadd [#allocation4], %s822
      %s825 = sshll.u32 [#allocation3], 4
      %s826 = int_to_ptr.vmem [resolvable:$true] %s825
      %828 = dma.vmem_to_hbm [thread:$0]  %s826, 16, %s9, [#allocation4]
    $region41: #{tpu_custom_call.1} parent=1 // pred_fallthru
      _
    // Predicated region
    $region42: #{tpu_custom_call.1} parent=1 // pred_check
      _
    $region43: #{tpu_custom_call.1} parent=1 // pred_check_branch
      %830 = sbr.rel (0) target = $region45
    $region44: #{tpu_custom_call.1} parent=1 // pred_region
      %831 = dma.done [#allocation4], 16
    $region45: #{tpu_custom_call.1} parent=1 // pred_fallthru
      _
    %832 = vsyncpa [#allocation4], 1

</llo_original>
